<compile_context>
chip_gen: v7x
topology: tpu7x:2x2x1
jax: 0.10.0
libtpu: 0.0.40
codegen_flags: <defaults>
</compile_context>

<pallas_src>
import functools

import jax
import jax.numpy as jnp
from jax import lax
from jax.experimental import pallas as pl
from jax.experimental.pallas import tpu as pltpu


_LANE = 128
_TARGET_STEP_BYTES = 8 * 1024 * 1024   # HBM bytes moved per grid step (both inputs)
_CHUNK_ELEMS = 64 * 1024                # elements per in-kernel compute chunk
_MAX_COLLAPSE_LANES = 16 * 1024         # widest lane dim kept without flattening
_VMEM_LIMIT_BYTES = 32 * 1024 * 1024    # covers v5e's 16 MiB scoped-VMEM default


def _cdiv(a, b):
    return -(-a // b)


def _round_up(x, m):
    return ((x + m - 1) // m) * m


def _mse_partial_kernel(o_ref, t_ref, out_ref, *, rows_total, tile_rows,
                        chunk_rows, blocks_per_part, may_mask):
    p = pl.program_id(0)   # "parallel" axis: shards the stream across TCs on v7x
    i = pl.program_id(1)   # "arbitrary" reduction axis

    @pl.when(i == 0)
    def _():
        out_ref[...] = jnp.zeros_like(out_ref)

    lanes = out_ref.shape[1]
    n_chunks = tile_rows // chunk_rows
    fold = (chunk_rows // 8, 8, lanes)   # keeps (sublane, lane) intact -> pure VPU adds

    def squared_diff(c):
        r0 = pl.multiple_of(c * chunk_rows, chunk_rows)
        oc = o_ref[pl.ds(r0, chunk_rows), :].astype(jnp.float32)
        tc = t_ref[pl.ds(r0, chunk_rows), :].astype(jnp.float32)
        d = oc - tc
        return d * d, r0

    def fast_body(c, acc):
        sq, _ = squared_diff(c)
        return acc + jnp.sum(sq.reshape(fold), axis=0)

    def accumulate_fast():
        out_ref[...] += lax.fori_loop(
            0, n_chunks, fast_body, jnp.zeros(out_ref.shape, jnp.float32))

    if not may_mask:
        # Statically known: every block is full and in range -> no mask code at all.
        accumulate_fast()
        return

    gidx = p * blocks_per_part + i          # un-clamped global block index
    block_row0 = gidx * tile_rows
    is_tail = block_row0 + tile_rows > rows_total

    @pl.when(jnp.logical_not(is_tail))
    def _():
        accumulate_fast()

    @pl.when(is_tail)
    def _():
        # Ragged last block and/or the clamped duplicate block when the block
        # count is odd: zero every row at or beyond rows_total.  Uses the
        # UN-clamped block start so the duplicate contributes exactly zero.
        def masked_body(c, acc):
            sq, r0 = squared_diff(c)
            rid = block_row0 + r0 + lax.broadcasted_iota(jnp.int32, sq.shape, 0)
            sq = jnp.where(rid < rows_total, sq, 0.0)
            return acc + jnp.sum(sq.reshape(fold), axis=0)

        out_ref[...] += lax.fori_loop(
            0, n_chunks, masked_body, jnp.zeros(out_ref.shape, jnp.float32))


def _prepare_2d(o, t):
    """View both inputs as (rows, lanes) with lanes % 128 == 0, plus a tiny tail."""
    n_total = o.size
    if (o.ndim >= 2 and o.shape[-1] % _LANE == 0
            and o.shape[-1] <= _MAX_COLLAPSE_LANES):
        # Layout-preserving: collapse leading dims only (no relayout copy).
        lanes = o.shape[-1]
        rows = n_total // lanes
        return o.reshape(rows, lanes), t.reshape(rows, lanes), rows, lanes, None, None

    # Fallback: flatten.  The <128-element lane tail is summed in the wrapper
    # instead of jnp.pad-ing (pad would copy BOTH full inputs in HBM).
    fo = o.reshape(-1)
    ft = t.reshape(-1)
    n_main = (n_total // _LANE) * _LANE
    if n_main == 0:
        # Degenerate (<128 elements total): a tiny pad is negligible here.
        pad = _LANE - n_total
        fo = jnp.pad(fo, (0, pad))
        ft = jnp.pad(ft, (0, pad))
        return fo.reshape(1, _LANE), ft.reshape(1, _LANE), 1, _LANE, None, None
    tail_o = fo[n_main:] if n_main < n_total else None
    tail_t = ft[n_main:] if n_main < n_total else None
    return (fo[:n_main].reshape(-1, _LANE), ft[:n_main].reshape(-1, _LANE),
            n_main // _LANE, _LANE, tail_o, tail_t)


def pt_net_mse_loss(output, target, *, block_rows=None):
    """Pallas equivalent of ptNetMSELoss.forward(output, target)."""
    assert output.shape == target.shape, "output/target shapes must match"
    n_total = output.size
    assert n_total > 0

    o2d, t2d, rows, lanes, tail_o, tail_t = _prepare_2d(output, target)

    item_o = o2d.dtype.itemsize
    item_t = t2d.dtype.itemsize
    # Row alignment covers sublane packing for the narrowest dtype (8 f32, 16 bf16).
    row_align = 8 * max(1, 4 // min(item_o, item_t))
    rows_padded = _round_up(rows, row_align)

    # DMA block size: target ~8 MiB of HBM traffic per grid step across both inputs.
    if block_rows is None:
        bytes_per_row = lanes * (item_o + item_t)
        block_rows = max(row_align, _TARGET_STEP_BYTES // bytes_per_row)
    tile_target = _round_up(max(row_align, min(int(block_rows), rows_padded)),
                            row_align)

    # Compute chunk: bounds f32 temporaries to ~1 MiB regardless of block size.
    chunk_rows = max(row_align, (_CHUNK_ELEMS // lanes) // row_align * row_align)
    chunk_rows = min(chunk_rows, tile_target)
    tile_rows = chunk_rows * max(1, tile_target // chunk_rows)

    total_blocks = _cdiv(rows, tile_rows)
    # Always split into 2 parts when there is >1 block: shards across both
    # v7x TensorCores; a negligible serial outer loop on v5e/v6e.
    parts = 2 if total_blocks >= 2 else 1
    blocks_per_part = _cdiv(total_blocks, parts)
    may_mask = (parts * blocks_per_part * tile_rows != rows)

    if parts * blocks_per_part > total_blocks:
        # Odd block count: clamp the overhanging step's DMA to the last valid
        # block; its contribution is zeroed by the in-kernel row mask.
        def in_map(p, i):
            return (jnp.minimum(p * blocks_per_part + i, total_blocks - 1), 0)
    else:
        def in_map(p, i):
            return (p * blocks_per_part + i, 0)

    kernel = functools.partial(
        _mse_partial_kernel,
        rows_total=rows, tile_rows=tile_rows, chunk_rows=chunk_rows,
        blocks_per_part=blocks_per_part, may_mask=may_mask)

    partials = pl.pallas_call(
        kernel,
        out_shape=jax.ShapeDtypeStruct((parts * 8, lanes), jnp.float32),
        grid_spec=pltpu.PrefetchScalarGridSpec(
            num_scalar_prefetch=0,
            grid=(parts, blocks_per_part),
            in_specs=[pl.BlockSpec((tile_rows, lanes), in_map),
                      pl.BlockSpec((tile_rows, lanes), in_map)],
            out_specs=pl.BlockSpec((8, lanes), lambda p, i: (p, 0)),
        ),
        compiler_params=pltpu.CompilerParams(
            dimension_semantics=("parallel", "arbitrary"),
            vmem_limit_bytes=_VMEM_LIMIT_BYTES,
        ),
    )(o2d, t2d)

    total = jnp.sum(partials)
    if tail_o is not None:
        dt = tail_o.astype(jnp.float32) - tail_t.astype(jnp.float32)
        total = total + jnp.sum(dt * dt)
    return total / n_total


def _reference(output, target):
    o = output.astype(jnp.float32)
    t = target.astype(jnp.float32)
    return jnp.mean((o - t) ** 2)


if __name__ == "__main__":
    key = jax.random.PRNGKey(0)
    ok = True

    def run_case(case_key, shape, dtype, rtol, **kwargs):
        k1, k2 = jax.random.split(case_key)
        o = jax.random.normal(k1, shape, dtype=jnp.float32).astype(dtype)
        t = jax.random.normal(k2, shape, dtype=jnp.float32).astype(dtype)
        loss = pt_net_mse_loss(o, t, **kwargs)
        jax.block_until_ready(loss)
        ref = _reference(o, t)
        return bool(jnp.allclose(loss, ref, rtol=rtol, atol=1e-6))

    keys = jax.random.split(key, 4)
    # 1) Canonical small NCHW input (flatten fallback path, single block).
    ok &= run_case(keys[0], (2, 4, 16, 16), jnp.float32, 1e-5)
    # 2) Awkward shape: lane tail summed in wrapper + in-kernel row-tail mask.
    ok &= run_case(keys[1], (3, 5, 7, 11), jnp.float32, 1e-5)
    # 3) bf16 with last dim a multiple of 128: layout-preserving collapse path,
    #    native-dtype streaming with in-kernel f32 cast.
    ok &= run_case(keys[2], (2, 16, 256), jnp.bfloat16, 1e-4)
    # 4) Multi-block with odd block count (72 rows / 16-row blocks = 5 blocks):
    #    exercises parts=2, the clamped duplicate block, and ragged masking.
    ok &= run_case(keys[3], (9, 8, 128), jnp.float32, 1e-5, block_rows=16)

    assert ok, "Pallas MSE loss mismatch vs reference"
    print("KERNEL_OK")
</pallas_src>

<mosaic_0001>
module attributes {stable_mosaic.version = 11 : i64} {
  func.func @_mse_partial_kernel(%arg0: i32, %arg1: i32, %arg2: memref<16x128xf32, #tpu.memory_space<vmem>>, %arg3: memref<16x128xf32, #tpu.memory_space<vmem>>, %arg4: memref<8x128xf32, #tpu.memory_space<vmem>>) attributes {dimension_semantics = [#tpu.dimension_semantics<parallel>, #tpu.dimension_semantics<arbitrary>], iteration_bounds = array<i64: 1, 1>, scalar_prefetch = 0 : i64, scratch_operands = 0 : i64, tpu.core_type = #tpu.core_type<tc>, window_params = [{transform_indices = @transform_0, window_bounds = array<i64: 16, 128>}, {transform_indices = @transform_1, window_bounds = array<i64: 16, 128>}, {transform_indices = @transform_2, window_bounds = array<i64: 8, 128>}]} {
    %c0_i32 = arith.constant 0 : i32
    %0 = arith.cmpi eq, %arg1, %c0_i32 : i32
    %1 = arith.extui %0 : i1 to i32
    %c0_i32_0 = arith.constant 0 : i32
    %2 = arith.cmpi ne, %1, %c0_i32_0 : i32
    scf.if %2 {
      %cst_8 = arith.constant 0.000000e+00 : f32
      %18 = vector.broadcast %cst_8 : f32 to vector<8x128xf32>
      %c0_9 = arith.constant 0 : index
      %c0_10 = arith.constant 0 : index
      %19 = vector.load %arg4[%c0_9, %c0_10] : memref<8x128xf32, #tpu.memory_space<vmem>>, vector<8x128xf32>
      tpu.vector_store %arg4[%c0_9, %c0_10], %18 {strides = array<i32>} : memref<8x128xf32, #tpu.memory_space<vmem>>, vector<8x128xf32>,
    } else {
    }
    %c0 = arith.constant 0 : index
    %c0_1 = arith.constant 0 : index
    %3 = vector.load %arg4[%c0, %c0_1] : memref<8x128xf32, #tpu.memory_space<vmem>>, vector<8x128xf32>
    %cst = arith.constant 0.000000e+00 : f32
    %4 = vector.broadcast %cst : f32 to vector<8x128xf32>
    %c0_i32_2 = arith.constant 0 : i32
    %c16_i32 = arith.constant 16 : i32
    %5 = arith.muli %c0_i32_2, %c16_i32 : i32
    %6 = tpu.assume_multiple %5, 16 : i32
    %7 = arith.index_cast %6 : i32 to index
    %c0_3 = arith.constant 0 : index
    %8 = vector.load %arg2[%7, %c0_3] : memref<16x128xf32, #tpu.memory_space<vmem>>, vector<16x128xf32>
    %9 = arith.index_cast %6 : i32 to index
    %c0_4 = arith.constant 0 : index
    %10 = vector.load %arg3[%9, %c0_4] : memref<16x128xf32, #tpu.memory_space<vmem>>, vector<16x128xf32>
    %11 = arith.subf %8, %10 : vector<16x128xf32>
    %12 = arith.mulf %11, %11 : vector<16x128xf32>
    %13 = vector.shape_cast %12 : vector<16x128xf32> to vector<2x8x128xf32>
    %cst_5 = arith.constant dense<0.000000e+00> : vector<8x128xf32>
    %14 = vector.multi_reduction <add>, %13, %cst_5 [0] : vector<2x8x128xf32> to vector<8x128xf32>
    %15 = arith.addf %4, %14 : vector<8x128xf32>
    %c1_i32 = arith.constant 1 : i32
    %16 = arith.addf %3, %15 : vector<8x128xf32>
    %c0_6 = arith.constant 0 : index
    %c0_7 = arith.constant 0 : index
    %17 = vector.load %arg4[%c0_6, %c0_7] : memref<8x128xf32, #tpu.memory_space<vmem>>, vector<8x128xf32>
    tpu.vector_store %arg4[%c0_6, %c0_7], %16 {strides = array<i32>} : memref<8x128xf32, #tpu.memory_space<vmem>>, vector<8x128xf32>,
    return
  }
  func.func @transform_0(%arg0: i32, %arg1: i32) -> (i32, i32) {
    %c1_i32 = arith.constant 1 : i32
    %0 = arith.muli %arg0, %c1_i32 : i32
    %1 = arith.addi %0, %arg1 : i32
    %c0_i32 = arith.constant 0 : i32
    %c0_i32_0 = arith.constant 0 : i32
    return %1, %c0_i32 : i32, i32
  }
  func.func @transform_1(%arg0: i32, %arg1: i32) -> (i32, i32) {
    %c1_i32 = arith.constant 1 : i32
    %0 = arith.muli %arg0, %c1_i32 : i32
    %1 = arith.addi %0, %arg1 : i32
    %c0_i32 = arith.constant 0 : i32
    %c0_i32_0 = arith.constant 0 : i32
    return %1, %c0_i32 : i32, i32
  }
  func.func @transform_2(%arg0: i32, %arg1: i32) -> (i32, i32) {
    %c0_i32 = arith.constant 0 : i32
    %c0_i32_0 = arith.constant 0 : i32
    return %arg0, %c0_i32 : i32, i32
  }
}

</mosaic_0001>

<llo_original>
// kernel: tpu_custom_call.1
$region0: #{tpu_custom_call.1}
  #allocation0 [shape = 'u32[]', space=smem, size = 0x4, offset = 0x4, fixed_abs, tag = 'smem constant byte address 0x4 - core index']
  #allocation1 [shape = 'u32[144,128]{1,0:T(1,128)}', space=vmem, size = 0x12000, scoped, tag = 'internal scratch']
  %s0 = inlined_call_operand.hbm [shape: f32[16,128], index: 0, kind: input, shape index: {}]
  %s1 = inlined_call_operand.hbm [shape: f32[16,128], index: 1, kind: input, shape index: {}]
  %s2 = inlined_call_operand.hbm [shape: f32[8,128], index: 2, kind: output, shape index: {}]
  %s3 = sld [smem:[#allocation0]]
  $region30: #{tpu_custom_call.1} parent=0
    _
  %s5 = ssub.s32 1, %s3
  %s6 = scalar_select 0, %s5, %s3
  $region1: #{tpu_custom_call.1} parent=0
    #allocation2 [shape = 'u8[8192]{0}', space=vmem, size = 0x2000, scoped, tag = 'input window, operand 0, single buffered']
    #allocation3 [shape = 's32[1]{0}', space=sflag, size = 0x4, scoped, tag = 'scoped memory for tpu_custom_call.1']
    #allocation4 [shape = 's32[1]{0}', space=sflag, size = 0x4, scoped, tag = 'scoped memory for tpu_custom_call.1']
    #allocation5 [shape = 'u8[8192]{0}', space=vmem, size = 0x2000, scoped, tag = 'input window, operand 1, single buffered']
    #allocation6 [shape = 's32[1]{0}', space=sflag, size = 0x4, scoped, tag = 'scoped memory for tpu_custom_call.1']
    #allocation7 [shape = 'u8[4096]{0}', space=vmem, size = 0x1000, scoped, tag = 'output window, operand 0, single buffered']
    %7 = vsyncpa [#allocation3], 0
    %8 = vsyncpa [#allocation6], 0
    %9 = vsyncpa [#allocation4], 0
    // Predicated region
    $region2: #{tpu_custom_call.1} parent=1 // pred_check
      _
    $region3: #{tpu_custom_call.1} parent=1 // pred_check_branch
      %11 = sbr.rel (0) target = $region5
    $region4: #{tpu_custom_call.1} parent=1 // pred_region
      %s12 = sadd.s32 0, 0
      %s13 = smul.u32 2, %s12
      %s15 = ssub.s32 256, 256
      %16 = vsyncadd [#allocation3], %s15
      %s17 = smul.addr %s13, 128
      %s18 = scalar_lea.hbm %s0, %s17
      %s19 = sshll.u32 [#allocation2], 4
      %s20 = int_to_ptr.vmem [resolvable:$true] %s19
      %25 = dma.hbm_to_vmem [thread:$0]  %s18, 256, %s20, [#allocation3], 128, 128, 8
    $region5: #{tpu_custom_call.1} parent=1 // pred_fallthru
      _
    // Predicated region
    $region6: #{tpu_custom_call.1} parent=1 // pred_check
      _
    $region7: #{tpu_custom_call.1} parent=1 // pred_check_branch
      %27 = sbr.rel (0) target = $region9
    $region8: #{tpu_custom_call.1} parent=1 // pred_region
      %s28 = sadd.s32 0, 0
      %s29 = smul.u32 2, %s28
      %s31 = ssub.s32 256, 256
      %32 = vsyncadd [#allocation6], %s31
      %s33 = smul.addr %s29, 128
      %s34 = scalar_lea.hbm %s1, %s33
      %s35 = sshll.u32 [#allocation5], 4
      %s36 = int_to_ptr.vmem [resolvable:$true] %s35
      %41 = dma.hbm_to_vmem [thread:$0]  %s34, 256, %s36, [#allocation6], 128, 128, 8
    $region9: #{tpu_custom_call.1} parent=1 // pred_fallthru
      _
    // Predicated region
    $region10: #{tpu_custom_call.1} parent=1 // pred_check
      _
    $region11: #{tpu_custom_call.1} parent=1 // pred_check_branch
      %43 = sbr.rel (0) target = $region13
    $region12: #{tpu_custom_call.1} parent=1 // pred_region
      %44 = dma.done [#allocation3], 256
    $region13: #{tpu_custom_call.1} parent=1 // pred_fallthru
      _
    // Predicated region
    $region14: #{tpu_custom_call.1} parent=1 // pred_check
      _
    $region15: #{tpu_custom_call.1} parent=1 // pred_check_branch
      %46 = sbr.rel (0) target = $region17
    $region16: #{tpu_custom_call.1} parent=1 // pred_region
      %47 = dma.done [#allocation6], 256
    $region17: #{tpu_custom_call.1} parent=1 // pred_fallthru
      _
    %s48 = sadd.s32 0, 0
    %s49 = smul.u32 2, %s48
    %s50 = sadd.s32 0, 0
    %s51 = smul.u32 2, %s50
    %p52 = scmp.eq.s32.totalorder 0, 0
    // Predicated region
    $region18: #{tpu_custom_call.1} parent=1 // pred_check
      %p53 = pneg %p52
    $region19: #{tpu_custom_call.1} parent=1 // pred_check_branch
      %55 = sbr.rel (%p53) target = $region21
    $region20: #{tpu_custom_call.1} parent=1 // pred_region
      %56 = vst [vmem:[#allocation7] sm:$0xff] 0.0
    $region21: #{tpu_custom_call.1} parent=1 // pred_fallthru
      _
    %v57 = vld [vmem:[#allocation7] sm:$0xff]
    %v58 = vld [vmem:[#allocation2] sm:$0xff]
    %v59 = vld [vmem:[#allocation2 + $0x8] sm:$0xff]
    %v60 = vld [vmem:[#allocation5] sm:$0xff]
    %v61 = vld [vmem:[#allocation5 + $0x8] sm:$0xff]
    %v62 = vsub.f32 %v58, %v60
    %v63 = vsub.f32 %v59, %v61
    %v64 = vmul.f32 %v62, %v62
    %v65 = vmul.f32 %v63, %v63
    %v66 = vadd.f32 %v64, %v65
    %v67 = vadd.f32 %v66, 0.0
    %v68 = vadd.f32 %v57, %v67
    %69 = vst [vmem:[#allocation7] sm:$0xff] %v68
    // Predicated region
    $region22: #{tpu_custom_call.1} parent=1 // pred_check
      _
    $region23: #{tpu_custom_call.1} parent=1 // pred_check_branch
      %71 = sbr.rel (0) target = $region25
    $region24: #{tpu_custom_call.1} parent=1 // pred_region
      %s73 = ssub.s32 128, 128
      %74 = vsyncadd [#allocation4], %s73
      %s76 = sshll.u32 [#allocation7], 4
      %s77 = int_to_ptr.vmem [resolvable:$true] %s76
      %79 = dma.vmem_to_hbm [thread:$0]  %s77, 128, %s2, [#allocation4]
    $region25: #{tpu_custom_call.1} parent=1 // pred_fallthru
      _
    // Predicated region
    $region26: #{tpu_custom_call.1} parent=1 // pred_check
      _
    $region27: #{tpu_custom_call.1} parent=1 // pred_check_branch
      %81 = sbr.rel (0) target = $region29
    $region28: #{tpu_custom_call.1} parent=1 // pred_region
      %82 = dma.done [#allocation4], 128
    $region29: #{tpu_custom_call.1} parent=1 // pred_fallthru
      _
    %83 = vsyncpa [#allocation3], 1
    %84 = vsyncpa [#allocation6], 1
    %85 = vsyncpa [#allocation4], 1

</llo_original>
